<compile_context>
chip_gen: v5e
topology: v5e:2x2
jax: 0.10.0
libtpu: 0.0.40
codegen_flags: <defaults>
</compile_context>

<pallas_src>
import functools

import jax
import jax.numpy as jnp
from jax.experimental import pallas as pl
from jax.experimental.pallas import tpu as pltpu


def fused_conv_sub_kernel(x_ref, w_ref, o_ref):
    """x_ref: [NB, KC1, T], w_ref: [Cout, KC1], o_ref: [NB, Cout, T]."""
    w = w_ref[...]
    # NB is small and static -> unrolled loop of plain MXU matmuls (no broadcast
    # of w, no in-VMEM reshuffling of the 512-channel output).
    for b in range(x_ref.shape[0]):
        o_ref[b, :, :] = jnp.dot(
            w, x_ref[b, :, :], preferred_element_type=jnp.float32
        ).astype(o_ref.dtype)


@functools.partial(jax.jit, static_argnames=("max_tile_hw", "matmul_dtype"))
def model_forward(x, weight, bias, *, max_tile_hw=4096,
                  matmul_dtype=jnp.bfloat16):
    """x: [N, Cin, H, W] f32 (NCHW); weight: [Cout, Cin, 1, KW]; bias: [Cout]."""
    n, cin, h, w = x.shape
    cout = weight.shape[0]
    kw = weight.shape[3]  # = 3
    hw = h * w

    # --- im2col along W, staying channels-first (no big transposes) ----------
    xp = jnp.pad(x, ((0, 0), (0, 0), (0, 0), (1, 1)))            # pad W by 1/1
    taps = [xp[:, :, :, t:t + w] for t in range(kw)]             # each [N,Cin,H,W]
    xcol = jnp.concatenate(taps, axis=1).reshape(n, kw * cin, hw)  # [N, K*Cin, HW]
    # TODO(synk): for very small H*W the XLA-side pad/slice/concat above is the
    # remaining launch-overhead hot spot; building the taps in-kernel with
    # pltpu.roll + row-boundary masking would remove it (not done here).

    # weight [Cout,Cin,1,KW] -> [Cout, KW*Cin] (tap-major / channel-minor, same
    # ordering as xcol), with the residual identity folded into the center tap:
    # out[co] -= x[co] for co < Cin  <=>  wcol[co, Cin + co] -= 1.
    wcol = jnp.transpose(weight[:, :, 0, :], (0, 2, 1)).reshape(cout, kw * cin)
    eye = jnp.zeros((cout, kw * cin), wcol.dtype).at[
        jnp.arange(cin), cin + jnp.arange(cin)].set(1.0)
    wcol = wcol - eye

    # Pack the bias as one extra contraction column (ones row on the input).
    kc1 = kw * cin + 1
    xfull = jnp.concatenate(
        [xcol, jnp.ones((n, 1, hw), xcol.dtype)], axis=1)             # [N, KC1, HW]
    wfull = jnp.concatenate(
        [wcol, bias.reshape(cout, 1).astype(wcol.dtype)], axis=1)     # [Cout, KC1]

    # bf16 MXU operands (f32 accumulate) by default.
    xfull = xfull.astype(matmul_dtype)
    wfull = wfull.astype(matmul_dtype)

    # --- tiling ---------------------------------------------------------------
    tile_hw = min(max_tile_hw, ((hw + 127) // 128) * 128)   # lane-dense stores
    nb = max(1, min(n, max_tile_hw // tile_hw))              # batches per step
    while n % nb:                                            # keep blocks exact
        nb -= 1
    grid = (n // nb, pl.cdiv(hw, tile_hw))

    out3d = pl.pallas_call(
        fused_conv_sub_kernel,
        out_shape=jax.ShapeDtypeStruct((n, cout, hw), jnp.float32),
        grid=grid,
        in_specs=[
            pl.BlockSpec((nb, kc1, tile_hw), lambda b, j: (b, 0, j)),
            pl.BlockSpec((cout, kc1), lambda b, j: (0, 0)),
        ],
        out_specs=pl.BlockSpec((nb, cout, tile_hw), lambda b, j: (b, 0, j)),
        compiler_params=pltpu.CompilerParams(
            dimension_semantics=("parallel", "parallel"),
            vmem_limit_bytes=40 * 1024 * 1024),
    )(xfull, wfull)

    return out3d.reshape(n, cout, h, w)   # already NCHW: free reshape, no transpose


def ref_forward(x, weight, bias):
    """Pure-JAX f32 reference of the (repaired) forward pass."""
    v1 = jax.lax.conv_general_dilated(
        x, weight, window_strides=(1, 1), padding=((0, 0), (1, 1)),
        dimension_numbers=("NCHW", "OIHW", "NCHW"))
    v1 = v1 + bias[None, :, None, None]
    x_ext = jnp.pad(
        x, ((0, 0), (0, weight.shape[0] - x.shape[1]), (0, 0), (0, 0)))
    return v1 - x_ext


if __name__ == "__main__":
    N, CIN, H, W = 2, 3, 8, 16
    COUT, KW = 512, 3

    key = jax.random.PRNGKey(0)
    kx, kw_, kb = jax.random.split(key, 3)

    x = jax.random.normal(kx, (N, CIN, H, W), dtype=jnp.float32)

    # Deterministic Conv2d-style init (kaiming-uniform-ish, fan_in = CIN*1*KW).
    fan_in = CIN * 1 * KW
    bound = 1.0 / jnp.sqrt(jnp.float32(fan_in))
    weight = jax.random.uniform(
        kw_, (COUT, CIN, 1, KW), minval=-bound, maxval=bound, dtype=jnp.float32)
    bias = jax.random.uniform(
        kb, (COUT,), minval=-bound, maxval=bound, dtype=jnp.float32)

    ref = ref_forward(x, weight, bias)

    # 1) Exactness check of the kernel logic with f32 operands.
    out_f32 = jax.block_until_ready(
        model_forward(x, weight, bias, matmul_dtype=jnp.float32))
    assert out_f32.shape == (N, COUT, H, W), out_f32.shape
    assert jnp.allclose(out_f32, ref, atol=1e-4, rtol=1e-4), float(
        jnp.max(jnp.abs(out_f32 - ref)))

    # 2) Default perf path: bf16 MXU operands, f32 accumulate/output.
    out = jax.block_until_ready(model_forward(x, weight, bias))
    assert out.shape == (N, COUT, H, W), out.shape
    assert jnp.allclose(out, ref, atol=1e-1, rtol=1e-1), float(
        jnp.max(jnp.abs(out - ref)))

    print("KERNEL_OK")
</pallas_src>

<mosaic_0001>
module attributes {stable_mosaic.version = 11 : i64} {
  func.func @fused_conv_sub_kernel(%arg0: i32, %arg1: i32, %arg2: memref<2x10x128xf32, #tpu.memory_space<vmem>>, %arg3: memref<512x10xf32, #tpu.memory_space<vmem>>, %arg4: memref<2x512x128xf32, #tpu.memory_space<vmem>>) attributes {dimension_semantics = [#tpu.dimension_semantics<parallel>, #tpu.dimension_semantics<parallel>], iteration_bounds = array<i64: 1, 1>, scalar_prefetch = 0 : i64, scratch_operands = 0 : i64, tpu.core_type = #tpu.core_type<tc>, window_params = [{transform_indices = @transform_0, window_bounds = array<i64: 2, 10, 128>}, {pipeline_mode = #tpu.pipeline_mode<synchronous>, transform_indices = @transform_1, window_bounds = array<i64: 512, 10>}, {transform_indices = @transform_2, window_bounds = array<i64: 2, 512, 128>}]} {
    %c0 = arith.constant 0 : index
    %c0_0 = arith.constant 0 : index
    %0 = vector.load %arg3[%c0, %c0_0] : memref<512x10xf32, #tpu.memory_space<vmem>>, vector<512x10xf32>
    %c0_1 = arith.constant 0 : index
    %c0_2 = arith.constant 0 : index
    %c0_3 = arith.constant 0 : index
    %1 = vector.load %arg2[%c0_1, %c0_2, %c0_3] : memref<2x10x128xf32, #tpu.memory_space<vmem>>, vector<1x10x128xf32>
    %2 = vector.shape_cast %1 : vector<1x10x128xf32> to vector<10x128xf32>
    %cst = arith.constant dense<0.000000e+00> : vector<512x128xf32>
    %3 = tpu.matmul %0, %2, %cst {dimension_numbers = #tpu.dot_dimension_numbers<[1], [0], [0], [1], [0, 0, 1, 1], [], []>} : vector<512x10xf32>, vector<10x128xf32>, vector<512x128xf32> -> vector<512x128xf32>
    %c0_4 = arith.constant 0 : index
    %c0_5 = arith.constant 0 : index
    %c0_6 = arith.constant 0 : index
    %4 = vector.load %arg4[%c0_4, %c0_5, %c0_6] : memref<2x512x128xf32, #tpu.memory_space<vmem>>, vector<1x512x128xf32>
    %5 = vector.shape_cast %4 : vector<1x512x128xf32> to vector<512x128xf32>
    %6 = vector.shape_cast %3 : vector<512x128xf32> to vector<1x512x128xf32>
    tpu.vector_store %arg4[%c0_4, %c0_5, %c0_6], %6 {strides = array<i32>} : memref<2x512x128xf32, #tpu.memory_space<vmem>>, vector<1x512x128xf32>,
    %c1 = arith.constant 1 : index
    %c0_7 = arith.constant 0 : index
    %c0_8 = arith.constant 0 : index
    %7 = vector.load %arg2[%c1, %c0_7, %c0_8] : memref<2x10x128xf32, #tpu.memory_space<vmem>>, vector<1x10x128xf32>
    %8 = vector.shape_cast %7 : vector<1x10x128xf32> to vector<10x128xf32>
    %cst_9 = arith.constant dense<0.000000e+00> : vector<512x128xf32>
    %9 = tpu.matmul %0, %8, %cst_9 {dimension_numbers = #tpu.dot_dimension_numbers<[1], [0], [0], [1], [0, 0, 1, 1], [], []>} : vector<512x10xf32>, vector<10x128xf32>, vector<512x128xf32> -> vector<512x128xf32>
    %c1_10 = arith.constant 1 : index
    %c0_11 = arith.constant 0 : index
    %c0_12 = arith.constant 0 : index
    %10 = vector.load %arg4[%c1_10, %c0_11, %c0_12] : memref<2x512x128xf32, #tpu.memory_space<vmem>>, vector<1x512x128xf32>
    %11 = vector.shape_cast %10 : vector<1x512x128xf32> to vector<512x128xf32>
    %12 = vector.shape_cast %9 : vector<512x128xf32> to vector<1x512x128xf32>
    tpu.vector_store %arg4[%c1_10, %c0_11, %c0_12], %12 {strides = array<i32>} : memref<2x512x128xf32, #tpu.memory_space<vmem>>, vector<1x512x128xf32>,
    return
  }
  func.func @transform_0(%arg0: i32, %arg1: i32) -> (i32, i32, i32) {
    %c0_i32 = arith.constant 0 : i32
    %c0_i32_0 = arith.constant 0 : i32
    return %arg0, %c0_i32, %arg1 : i32, i32, i32
  }
  func.func @transform_1(%arg0: i32, %arg1: i32) -> (i32, i32) {
    %c0_i32 = arith.constant 0 : i32
    %c0_i32_0 = arith.constant 0 : i32
    %c0_i32_1 = arith.constant 0 : i32
    return %c0_i32, %c0_i32_0 : i32, i32
  }
  func.func @transform_2(%arg0: i32, %arg1: i32) -> (i32, i32, i32) {
    %c0_i32 = arith.constant 0 : i32
    %c0_i32_0 = arith.constant 0 : i32
    return %arg0, %c0_i32, %arg1 : i32, i32, i32
  }
}

</mosaic_0001>

<llo_original>
// kernel: sub.1
$region0: #{sub.1}
  #allocation0 [shape = 's32[1]{0}', space=sflag, size = 0x4, scoped, tag = 'scoped memory for sub.1']
  %s0 = inlined_call_operand.vmem [shape: f32[512,9], index: 0, kind: input, shape index: {}]
  %s1 = inlined_call_operand.vmem [shape: f32[512,9], index: 1, kind: input, shape index: {}]
  %s2 = inlined_call_operand.vmem [shape: f32[512,9], index: 2, kind: output, shape index: {}]
  %v3 = vld [vmem:[%s0] sm:$0xff]
  %v4 = vld [vmem:[%s1] sm:$0xff]
  %5 = xla_tuple %v3, %v4
  %6 = xla_tuple %5
  %v7 = vsub.f32 %v3, %v4
  %8 = xla_tuple %v7
  %9 = vst [vmem:[%s2] sm:$0xff] %v7
  %s10 = scalar_lea.vmem %s0, 32
  %v11 = vld [vmem:[%s10] sm:$0xff]
  %s12 = scalar_lea.vmem %s1, 32
  %v13 = vld [vmem:[%s12] sm:$0xff]
  %14 = xla_tuple %v11, %v13
  %15 = xla_tuple %14
  %v16 = vsub.f32 %v11, %v13
  %17 = xla_tuple %v16
  %s18 = scalar_lea.vmem %s2, 32
  %19 = vst [vmem:[%s18] sm:$0xff] %v16
  %s20 = scalar_lea.vmem %s0, 8
  %v21 = vld [vmem:[%s20] sm:$0xff]
  %s22 = scalar_lea.vmem %s1, 8
  %v23 = vld [vmem:[%s22] sm:$0xff]
  %24 = xla_tuple %v21, %v23
  %25 = xla_tuple %24
  %v26 = vsub.f32 %v21, %v23
  %27 = xla_tuple %v26
  %s28 = scalar_lea.vmem %s2, 8
  %29 = vst [vmem:[%s28] sm:$0xff] %v26
  %s30 = scalar_lea.vmem %s0, 40
  %v31 = vld [vmem:[%s30] sm:$0xff]
  %s32 = scalar_lea.vmem %s1, 40
  %v33 = vld [vmem:[%s32] sm:$0xff]
  %34 = xla_tuple %v31, %v33
  %35 = xla_tuple %34
  %v36 = vsub.f32 %v31, %v33
  %37 = xla_tuple %v36
  %s38 = scalar_lea.vmem %s2, 40
  %39 = vst [vmem:[%s38] sm:$0xff] %v36
  %s40 = scalar_lea.vmem %s0, 16
  %v41 = vld [vmem:[%s40] sm:$0xff]
  %s42 = scalar_lea.vmem %s1, 16
  %v43 = vld [vmem:[%s42] sm:$0xff]
  %44 = xla_tuple %v41, %v43
  %45 = xla_tuple %44
  %v46 = vsub.f32 %v41, %v43
  %47 = xla_tuple %v46
  %s48 = scalar_lea.vmem %s2, 16
  %49 = vst [vmem:[%s48] sm:$0xff] %v46
  %s50 = scalar_lea.vmem %s0, 48
  %v51 = vld [vmem:[%s50] sm:$0xff]
  %s52 = scalar_lea.vmem %s1, 48
  %v53 = vld [vmem:[%s52] sm:$0xff]
  %54 = xla_tuple %v51, %v53
  %55 = xla_tuple %54
  %v56 = vsub.f32 %v51, %v53
  %57 = xla_tuple %v56
  %s58 = scalar_lea.vmem %s2, 48
  %59 = vst [vmem:[%s58] sm:$0xff] %v56
  %s60 = scalar_lea.vmem %s0, 24
  %v61 = vld [vmem:[%s60] sm:$0xff]
  %s62 = scalar_lea.vmem %s1, 24
  %v63 = vld [vmem:[%s62] sm:$0xff]
  %64 = xla_tuple %v61, %v63
  %65 = xla_tuple %64
  %v66 = vsub.f32 %v61, %v63
  %67 = xla_tuple %v66
  %s68 = scalar_lea.vmem %s2, 24
  %69 = vst [vmem:[%s68] sm:$0xff] %v66
  %s70 = scalar_lea.vmem %s0, 56
  %v71 = vld [vmem:[%s70] sm:$0xff]
  %s72 = scalar_lea.vmem %s1, 56
  %v73 = vld [vmem:[%s72] sm:$0xff]
  %74 = xla_tuple %v71, %v73
  %75 = xla_tuple %74
  %v76 = vsub.f32 %v71, %v73
  %77 = xla_tuple %v76
  %s78 = scalar_lea.vmem %s2, 56
  %79 = vst [vmem:[%s78] sm:$0xff] %v76

// kernel: model_forward.1
$region0: #{model_forward.1}
  #allocation0 [shape = 'u32[]', space=smem, size = 0x4, offset = 0x4, fixed_abs, tag = 'smem constant byte address 0x4 - core index']
  #allocation1 [shape = 'u32[72,128]{1,0:T(1,128)}', space=vmem, size = 0x9000, scoped, tag = 'internal scratch']
  %s0 = inlined_call_operand.vmem [shape: f32[2,10,128], index: 0, kind: input, shape index: {}]
  %s1 = inlined_call_operand.vmem [shape: f32[512,10], index: 1, kind: input, shape index: {}]
  %s2 = inlined_call_operand.vmem [shape: f32[2,512,128], index: 2, kind: output, shape index: {}]
  %s3 = sld [smem:[#allocation0]]
  $region18: #{model_forward.1} parent=0
    _
  %s5 = ssub.s32 1, %s3
  %s6 = scalar_select 0, %s5, %s3
  // Predicated region
  $region2: #{model_forward.1} parent=0 // pred_check
    _
  $region3: #{model_forward.1} parent=0 // pred_check_branch
    %8 = sbr.rel (0) target = $region5
  $region4: #{model_forward.1} parent=0 // pred_region
    _
  $region5: #{model_forward.1} parent=0 // pred_fallthru
    _
  // Predicated region
  $region6: #{model_forward.1} parent=0 // pred_check
    _
  $region7: #{model_forward.1} parent=0 // pred_check_branch
    %10 = sbr.rel (0) target = $region9
  $region8: #{model_forward.1} parent=0 // pred_region
    _
  $region9: #{model_forward.1} parent=0 // pred_fallthru
    _
  %v11 = vld [vmem:[%s1] sm:$0xff]
  %v12 = vld [vmem:[%s1 + $0x8] sm:$0xff]
  %v13 = vld [vmem:[%s1 + $0x10] sm:$0xff]
  %v14 = vld [vmem:[%s1 + $0x18] sm:$0xff]
  %v15 = vld [vmem:[%s1 + $0x20] sm:$0xff]
  %v16 = vld [vmem:[%s1 + $0x28] sm:$0xff]
  %v17 = vld [vmem:[%s1 + $0x30] sm:$0xff]
  %v18 = vld [vmem:[%s1 + $0x38] sm:$0xff]
  %v19 = vld [vmem:[%s1 + $0x40] sm:$0xff]
  %v20 = vld [vmem:[%s1 + $0x48] sm:$0xff]
  %v21 = vld [vmem:[%s1 + $0x50] sm:$0xff]
  %v22 = vld [vmem:[%s1 + $0x58] sm:$0xff]
  %v23 = vld [vmem:[%s1 + $0x60] sm:$0xff]
  %v24 = vld [vmem:[%s1 + $0x68] sm:$0xff]
  %v25 = vld [vmem:[%s1 + $0x70] sm:$0xff]
  %v26 = vld [vmem:[%s1 + $0x78] sm:$0xff]
  %v27 = vld [vmem:[%s1 + $0x80] sm:$0xff]
  %v28 = vld [vmem:[%s1 + $0x88] sm:$0xff]
  %v29 = vld [vmem:[%s1 + $0x90] sm:$0xff]
  %v30 = vld [vmem:[%s1 + $0x98] sm:$0xff]
  %v31 = vld [vmem:[%s1 + $0xa0] sm:$0xff]
  %v32 = vld [vmem:[%s1 + $0xa8] sm:$0xff]
  %v33 = vld [vmem:[%s1 + $0xb0] sm:$0xff]
  %v34 = vld [vmem:[%s1 + $0xb8] sm:$0xff]
  %v35 = vld [vmem:[%s1 + $0xc0] sm:$0xff]
  %v36 = vld [vmem:[%s1 + $0xc8] sm:$0xff]
  %v37 = vld [vmem:[%s1 + $0xd0] sm:$0xff]
  %v38 = vld [vmem:[%s1 + $0xd8] sm:$0xff]
  %v39 = vld [vmem:[%s1 + $0xe0] sm:$0xff]
  %v40 = vld [vmem:[%s1 + $0xe8] sm:$0xff]
  %v41 = vld [vmem:[%s1 + $0xf0] sm:$0xff]
  %v42 = vld [vmem:[%s1 + $0xf8] sm:$0xff]
  %v43 = vld [vmem:[%s1 + $0x100] sm:$0xff]
  %v44 = vld [vmem:[%s1 + $0x108] sm:$0xff]
  %v45 = vld [vmem:[%s1 + $0x110] sm:$0xff]
  %v46 = vld [vmem:[%s1 + $0x118] sm:$0xff]
  %v47 = vld [vmem:[%s1 + $0x120] sm:$0xff]
  %v48 = vld [vmem:[%s1 + $0x128] sm:$0xff]
  %v49 = vld [vmem:[%s1 + $0x130] sm:$0xff]
  %v50 = vld [vmem:[%s1 + $0x138] sm:$0xff]
  %v51 = vld [vmem:[%s1 + $0x140] sm:$0xff]
  %v52 = vld [vmem:[%s1 + $0x148] sm:$0xff]
  %v53 = vld [vmem:[%s1 + $0x150] sm:$0xff]
  %v54 = vld [vmem:[%s1 + $0x158] sm:$0xff]
  %v55 = vld [vmem:[%s1 + $0x160] sm:$0xff]
  %v56 = vld [vmem:[%s1 + $0x168] sm:$0xff]
  %v57 = vld [vmem:[%s1 + $0x170] sm:$0xff]
  %v58 = vld [vmem:[%s1 + $0x178] sm:$0xff]
  %v59 = vld [vmem:[%s1 + $0x180] sm:$0xff]
  %v60 = vld [vmem:[%s1 + $0x188] sm:$0xff]
  %v61 = vld [vmem:[%s1 + $0x190] sm:$0xff]
  %v62 = vld [vmem:[%s1 + $0x198] sm:$0xff]
  %v63 = vld [vmem:[%s1 + $0x1a0] sm:$0xff]
  %v64 = vld [vmem:[%s1 + $0x1a8] sm:$0xff]
  %v65 = vld [vmem:[%s1 + $0x1b0] sm:$0xff]
  %v66 = vld [vmem:[%s1 + $0x1b8] sm:$0xff]
  %v67 = vld [vmem:[%s1 + $0x1c0] sm:$0xff]
  %v68 = vld [vmem:[%s1 + $0x1c8] sm:$0xff]
  %v69 = vld [vmem:[%s1 + $0x1d0] sm:$0xff]
  %v70 = vld [vmem:[%s1 + $0x1d8] sm:$0xff]
  %v71 = vld [vmem:[%s1 + $0x1e0] sm:$0xff]
  %v72 = vld [vmem:[%s1 + $0x1e8] sm:$0xff]
  %v73 = vld [vmem:[%s1 + $0x1f0] sm:$0xff]
  %v74 = vld [vmem:[%s1 + $0x1f8] sm:$0xff]
  %v75 = vld [vmem:[%s0] sm:$0xff]
  %v76 = vld [vmem:[%s0 + $0x8] sm:$0x3]
  %vm77 = vcmask 80896
  %v79 = vsel %vm77, %v11, 0
  %v82 = vsel %vm77, %v12, 0
  %v85 = vsel %vm77, %v13, 0
  %v88 = vsel %vm77, %v14, 0
  %v91 = vsel %vm77, %v15, 0
  %v94 = vsel %vm77, %v16, 0
  %v97 = vsel %vm77, %v17, 0
  %v100 = vsel %vm77, %v18, 0
  %v103 = vsel %vm77, %v19, 0
  %v106 = vsel %vm77, %v20, 0
  %v109 = vsel %vm77, %v21, 0
  %v112 = vsel %vm77, %v22, 0
  %v115 = vsel %vm77, %v23, 0
  %v118 = vsel %vm77, %v24, 0
  %v121 = vsel %vm77, %v25, 0
  %v124 = vsel %vm77, %v26, 0
  %v127 = vsel %vm77, %v27, 0
  %v130 = vsel %vm77, %v28, 0
  %v133 = vsel %vm77, %v29, 0
  %v136 = vsel %vm77, %v30, 0
  %v139 = vsel %vm77, %v31, 0
  %v142 = vsel %vm77, %v32, 0
  %v145 = vsel %vm77, %v33, 0
  %v148 = vsel %vm77, %v34, 0
  %v151 = vsel %vm77, %v35, 0
  %v154 = vsel %vm77, %v36, 0
  %v157 = vsel %vm77, %v37, 0
  %v160 = vsel %vm77, %v38, 0
  %v163 = vsel %vm77, %v39, 0
  %v166 = vsel %vm77, %v40, 0
  %v169 = vsel %vm77, %v41, 0
  %v172 = vsel %vm77, %v42, 0
  %v175 = vsel %vm77, %v43, 0
  %v178 = vsel %vm77, %v44, 0
  %v181 = vsel %vm77, %v45, 0
  %v184 = vsel %vm77, %v46, 0
  %v187 = vsel %vm77, %v47, 0
  %v190 = vsel %vm77, %v48, 0
  %v193 = vsel %vm77, %v49, 0
  %v196 = vsel %vm77, %v50, 0
  %v199 = vsel %vm77, %v51, 0
  %v202 = vsel %vm77, %v52, 0
  %v205 = vsel %vm77, %v53, 0
  %v208 = vsel %vm77, %v54, 0
  %v211 = vsel %vm77, %v55, 0
  %v214 = vsel %vm77, %v56, 0
  %v217 = vsel %vm77, %v57, 0
  %v220 = vsel %vm77, %v58, 0
  %v223 = vsel %vm77, %v59, 0
  %v226 = vsel %vm77, %v60, 0
  %v229 = vsel %vm77, %v61, 0
  %v232 = vsel %vm77, %v62, 0
  %v235 = vsel %vm77, %v63, 0
  %v238 = vsel %vm77, %v64, 0
  %v241 = vsel %vm77, %v65, 0
  %v244 = vsel %vm77, %v66, 0
  %v247 = vsel %vm77, %v67, 0
  %v250 = vsel %vm77, %v68, 0
  %v253 = vsel %vm77, %v69, 0
  %v256 = vsel %vm77, %v70, 0
  %v259 = vsel %vm77, %v71, 0
  %v262 = vsel %vm77, %v72, 0
  %v265 = vsel %vm77, %v73, 0
  %v268 = vsel %vm77, %v74, 0
  %vm270 = vcmask 1041408
  %v272 = vsel %vm270, %v76, 0
  %274 = vmatpush.msra.mxu0 0.0
  %275 = vmatpush.msra.mxu0 0.0
  %276 = vmatpush.msra.mxu0 0.0
  %277 = vmatpush.msra.mxu0 0.0
  %278 = vmatpush.msra.mxu0 0.0
  %279 = vmatpush.msra.mxu0 0.0
  %280 = vmatpush.msra.mxu0 0.0
  %281 = vmatpush.msra.mxu0 0.0
  %282 = vmatpush.msra.mxu0 0.0
  %283 = vmatpush.msra.mxu0 0.0
  %284 = vmatpush.msra.mxu0 0.0
  %285 = vmatpush.msra.mxu0 0.0
  %286 = vmatpush.msra.mxu0 0.0
  %287 = vmatpush.msra.mxu0 0.0
  %288 = vmatpush.msra.mxu0 %v272
  %289 = vmatpush.msra.mxu0 %v75
  %290 = vmatmul.f32.gmra.mxu0 %v79
  %v291 = vpop.f32.mrf.mxu0
  %v292 = vadd.f32 0.0, %v291
  %293 = vmatmul.f32.gmra.mxu0 %v82
  %v294 = vpop.f32.mrf.mxu0
  %v295 = vadd.f32 0.0, %v294
  %296 = vmatmul.f32.gmra.mxu0 %v85
  %v297 = vpop.f32.mrf.mxu0
  %v298 = vadd.f32 0.0, %v297
  %299 = vmatmul.f32.gmra.mxu0 %v88
  %v300 = vpop.f32.mrf.mxu0
  %v301 = vadd.f32 0.0, %v300
  %302 = vmatmul.f32.gmra.mxu0 %v91
  %v303 = vpop.f32.mrf.mxu0
  %v304 = vadd.f32 0.0, %v303
  %305 = vmatmul.f32.gmra.mxu0 %v94
  %v306 = vpop.f32.mrf.mxu0
  %v307 = vadd.f32 0.0, %v306
  %308 = vmatmul.f32.gmra.mxu0 %v97
  %v309 = vpop.f32.mrf.mxu0
  %v310 = vadd.f32 0.0, %v309
  %311 = vmatmul.f32.gmra.mxu0 %v100
  %v312 = vpop.f32.mrf.mxu0
  %v313 = vadd.f32 0.0, %v312
  %314 = vmatmul.f32.gmra.mxu0 %v103
  %v315 = vpop.f32.mrf.mxu0
  %v316 = vadd.f32 0.0, %v315
  %317 = vmatmul.f32.gmra.mxu0 %v106
  %v318 = vpop.f32.mrf.mxu0
  %v319 = vadd.f32 0.0, %v318
  %320 = vmatmul.f32.gmra.mxu0 %v109
  %v321 = vpop.f32.mrf.mxu0
  %v322 = vadd.f32 0.0, %v321
  %323 = vmatmul.f32.gmra.mxu0 %v112
  %v324 = vpop.f32.mrf.mxu0
  %v325 = vadd.f32 0.0, %v324
  %326 = vmatmul.f32.gmra.mxu0 %v115
  %v327 = vpop.f32.mrf.mxu0
  %v328 = vadd.f32 0.0, %v327
  %329 = vmatmul.f32.gmra.mxu0 %v118
  %v330 = vpop.f32.mrf.mxu0
  %v331 = vadd.f32 0.0, %v330
  %332 = vmatmul.f32.gmra.mxu0 %v121
  %v333 = vpop.f32.mrf.mxu0
  %v334 = vadd.f32 0.0, %v333
  %335 = vmatmul.f32.gmra.mxu0 %v124
  %v336 = vpop.f32.mrf.mxu0
  %v337 = vadd.f32 0.0, %v336
  %338 = vmatmul.f32.gmra.mxu0 %v127
  %v339 = vpop.f32.mrf.mxu0
  %v340 = vadd.f32 0.0, %v339
  %341 = vmatmul.f32.gmra.mxu0 %v130
  %v342 = vpop.f32.mrf.mxu0
  %v343 = vadd.f32 0.0, %v342
  %344 = vmatmul.f32.gmra.mxu0 %v133
  %v345 = vpop.f32.mrf.mxu0
  %v346 = vadd.f32 0.0, %v345
  %347 = vmatmul.f32.gmra.mxu0 %v136
  %v348 = vpop.f32.mrf.mxu0
  %v349 = vadd.f32 0.0, %v348
  %350 = vmatmul.f32.gmra.mxu0 %v139
  %v351 = vpop.f32.mrf.mxu0
  %v352 = vadd.f32 0.0, %v351
  %353 = vmatmul.f32.gmra.mxu0 %v142
  %v354 = vpop.f32.mrf.mxu0
  %v355 = vadd.f32 0.0, %v354
  %356 = vmatmul.f32.gmra.mxu0 %v145
  %v357 = vpop.f32.mrf.mxu0
  %v358 = vadd.f32 0.0, %v357
  %359 = vmatmul.f32.gmra.mxu0 %v148
  %v360 = vpop.f32.mrf.mxu0
  %v361 = vadd.f32 0.0, %v360
  %362 = vmatmul.f32.gmra.mxu0 %v151
  %v363 = vpop.f32.mrf.mxu0
  %v364 = vadd.f32 0.0, %v363
  %365 = vmatmul.f32.gmra.mxu0 %v154
  %v366 = vpop.f32.mrf.mxu0
  %v367 = vadd.f32 0.0, %v366
  %368 = vmatmul.f32.gmra.mxu0 %v157
  %v369 = vpop.f32.mrf.mxu0
  %v370 = vadd.f32 0.0, %v369
  %371 = vmatmul.f32.gmra.mxu0 %v160
  %v372 = vpop.f32.mrf.mxu0
  %v373 = vadd.f32 0.0, %v372
  %374 = vmatmul.f32.gmra.mxu0 %v163
  %v375 = vpop.f32.mrf.mxu0
  %v376 = vadd.f32 0.0, %v375
  %377 = vmatmul.f32.gmra.mxu0 %v166
  %v378 = vpop.f32.mrf.mxu0
  %v379 = vadd.f32 0.0, %v378
  %380 = vmatmul.f32.gmra.mxu0 %v169
  %v381 = vpop.f32.mrf.mxu0
  %v382 = vadd.f32 0.0, %v381
  %383 = vmatmul.f32.gmra.mxu0 %v172
  %v384 = vpop.f32.mrf.mxu0
  %v385 = vadd.f32 0.0, %v384
  %386 = vmatmul.f32.gmra.mxu0 %v175
  %v387 = vpop.f32.mrf.mxu0
  %v388 = vadd.f32 0.0, %v387
  %389 = vmatmul.f32.gmra.mxu0 %v178
  %v390 = vpop.f32.mrf.mxu0
  %v391 = vadd.f32 0.0, %v390
  %392 = vmatmul.f32.gmra.mxu0 %v181
  %v393 = vpop.f32.mrf.mxu0
  %v394 = vadd.f32 0.0, %v393
  %395 = vmatmul.f32.gmra.mxu0 %v184
  %v396 = vpop.f32.mrf.mxu0
  %v397 = vadd.f32 0.0, %v396
  %398 = vmatmul.f32.gmra.mxu0 %v187
  %v399 = vpop.f32.mrf.mxu0
  %v400 = vadd.f32 0.0, %v399
  %401 = vmatmul.f32.gmra.mxu0 %v190
  %v402 = vpop.f32.mrf.mxu0
  %v403 = vadd.f32 0.0, %v402
  %404 = vmatmul.f32.gmra.mxu0 %v193
  %v405 = vpop.f32.mrf.mxu0
  %v406 = vadd.f32 0.0, %v405
  %407 = vmatmul.f32.gmra.mxu0 %v196
  %v408 = vpop.f32.mrf.mxu0
  %v409 = vadd.f32 0.0, %v408
  %410 = vmatmul.f32.gmra.mxu0 %v199
  %v411 = vpop.f32.mrf.mxu0
  %v412 = vadd.f32 0.0, %v411
  %413 = vmatmul.f32.gmra.mxu0 %v202
  %v414 = vpop.f32.mrf.mxu0
  %v415 = vadd.f32 0.0, %v414
  %416 = vmatmul.f32.gmra.mxu0 %v205
  %v417 = vpop.f32.mrf.mxu0
  %v418 = vadd.f32 0.0, %v417
  %419 = vmatmul.f32.gmra.mxu0 %v208
  %v420 = vpop.f32.mrf.mxu0
  %v421 = vadd.f32 0.0, %v420
  %422 = vmatmul.f32.gmra.mxu0 %v211
  %v423 = vpop.f32.mrf.mxu0
  %v424 = vadd.f32 0.0, %v423
  %425 = vmatmul.f32.gmra.mxu0 %v214
  %v426 = vpop.f32.mrf.mxu0
  %v427 = vadd.f32 0.0, %v426
  %428 = vmatmul.f32.gmra.mxu0 %v217
  %v429 = vpop.f32.mrf.mxu0
  %v430 = vadd.f32 0.0, %v429
  %431 = vmatmul.f32.gmra.mxu0 %v220
  %v432 = vpop.f32.mrf.mxu0
  %v433 = vadd.f32 0.0, %v432
  %434 = vmatmul.f32.gmra.mxu0 %v223
  %v435 = vpop.f32.mrf.mxu0
  %v436 = vadd.f32 0.0, %v435
  %437 = vmatmul.f32.gmra.mxu0 %v226
  %v438 = vpop.f32.mrf.mxu0
  %v439 = vadd.f32 0.0, %v438
  %440 = vmatmul.f32.gmra.mxu0 %v229
  %v441 = vpop.f32.mrf.mxu0
  %v442 = vadd.f32 0.0, %v441
  %443 = vmatmul.f32.gmra.mxu0 %v232
  %v444 = vpop.f32.mrf.mxu0
  %v445 = vadd.f32 0.0, %v444
  %446 = vmatmul.f32.gmra.mxu0 %v235
  %v447 = vpop.f32.mrf.mxu0
  %v448 = vadd.f32 0.0, %v447
  %449 = vmatmul.f32.gmra.mxu0 %v238
  %v450 = vpop.f32.mrf.mxu0
  %v451 = vadd.f32 0.0, %v450
  %452 = vmatmul.f32.gmra.mxu0 %v241
  %v453 = vpop.f32.mrf.mxu0
  %v454 = vadd.f32 0.0, %v453
  %455 = vmatmul.f32.gmra.mxu0 %v244
  %v456 = vpop.f32.mrf.mxu0
  %v457 = vadd.f32 0.0, %v456
  %458 = vmatmul.f32.gmra.mxu0 %v247
  %v459 = vpop.f32.mrf.mxu0
  %v460 = vadd.f32 0.0, %v459
  %461 = vmatmul.f32.gmra.mxu0 %v250
  %v462 = vpop.f32.mrf.mxu0
  %v463 = vadd.f32 0.0, %v462
  %464 = vmatmul.f32.gmra.mxu0 %v253
  %v465 = vpop.f32.mrf.mxu0
  %v466 = vadd.f32 0.0, %v465
  %467 = vmatmul.f32.gmra.mxu0 %v256
  %v468 = vpop.f32.mrf.mxu0
  %v469 = vadd.f32 0.0, %v468
  %470 = vmatmul.f32.gmra.mxu0 %v259
  %v471 = vpop.f32.mrf.mxu0
  %v472 = vadd.f32 0.0, %v471
  %473 = vmatmul.f32.gmra.mxu0 %v262
  %v474 = vpop.f32.mrf.mxu0
  %v475 = vadd.f32 0.0, %v474
  %476 = vmatmul.f32.gmra.mxu0 %v265
  %v477 = vpop.f32.mrf.mxu0
  %v478 = vadd.f32 0.0, %v477
  %479 = vmatmul.f32.gmra.mxu0 %v268
  %v480 = vpop.f32.mrf.mxu0
  %v481 = vadd.f32 0.0, %v480
  %482 = vdwg.mxu0
  %483 = vst [vmem:[%s2] sm:$0xff] %v292
  %484 = vst [vmem:[%s2 + $0x8] sm:$0xff] %v295
  %485 = vst [vmem:[%s2 + $0x10] sm:$0xff] %v298
  %486 = vst [vmem:[%s2 + $0x18] sm:$0xff] %v301
  %487 = vst [vmem:[%s2 + $0x20] sm:$0xff] %v304
  %488 = vst [vmem:[%s2 + $0x28] sm:$0xff] %v307
  %489 = vst [vmem:[%s2 + $0x30] sm:$0xff] %v310
  %490 = vst [vmem:[%s2 + $0x38] sm:$0xff] %v313
  %491 = vst [vmem:[%s2 + $0x40] sm:$0xff] %v316
  %492 = vst [vmem:[%s2 + $0x48] sm:$0xff] %v319
  %493 = vst [vmem:[%s2 + $0x50] sm:$0xff] %v322
  %494 = vst [vmem:[%s2 + $0x58] sm:$0xff] %v325
  %495 = vst [vmem:[%s2 + $0x60] sm:$0xff] %v328
  %496 = vst [vmem:[%s2 + $0x68] sm:$0xff] %v331
  %497 = vst [vmem:[%s2 + $0x70] sm:$0xff] %v334
  %498 = vst [vmem:[%s2 + $0x78] sm:$0xff] %v337
  %499 = vst [vmem:[%s2 + $0x80] sm:$0xff] %v340
  %500 = vst [vmem:[%s2 + $0x88] sm:$0xff] %v343
  %501 = vst [vmem:[%s2 + $0x90] sm:$0xff] %v346
  %502 = vst [vmem:[%s2 + $0x98] sm:$0xff] %v349
  %503 = vst [vmem:[%s2 + $0xa0] sm:$0xff] %v352
  %504 = vst [vmem:[%s2 + $0xa8] sm:$0xff] %v355
  %505 = vst [vmem:[%s2 + $0xb0] sm:$0xff] %v358
  %506 = vst [vmem:[%s2 + $0xb8] sm:$0xff] %v361
  %507 = vst [vmem:[%s2 + $0xc0] sm:$0xff] %v364
  %508 = vst [vmem:[%s2 + $0xc8] sm:$0xff] %v367
  %509 = vst [vmem:[%s2 + $0xd0] sm:$0xff] %v370
  %510 = vst [vmem:[%s2 + $0xd8] sm:$0xff] %v373
  %511 = vst [vmem:[%s2 + $0xe0] sm:$0xff] %v376
  %512 = vst [vmem:[%s2 + $0xe8] sm:$0xff] %v379
  %513 = vst [vmem:[%s2 + $0xf0] sm:$0xff] %v382
  %514 = vst [vmem:[%s2 + $0xf8] sm:$0xff] %v385
  %515 = vst [vmem:[%s2 + $0x100] sm:$0xff] %v388
  %516 = vst [vmem:[%s2 + $0x108] sm:$0xff] %v391
  %517 = vst [vmem:[%s2 + $0x110] sm:$0xff] %v394
  %518 = vst [vmem:[%s2 + $0x118] sm:$0xff] %v397
  %519 = vst [vmem:[%s2 + $0x120] sm:$0xff] %v400
  %520 = vst [vmem:[%s2 + $0x128] sm:$0xff] %v403
  %521 = vst [vmem:[%s2 + $0x130] sm:$0xff] %v406
  %522 = vst [vmem:[%s2 + $0x138] sm:$0xff] %v409
  %523 = vst [vmem:[%s2 + $0x140] sm:$0xff] %v412
  %524 = vst [vmem:[%s2 + $0x148] sm:$0xff] %v415
  %525 = vst [vmem:[%s2 + $0x150] sm:$0xff] %v418
  %526 = vst [vmem:[%s2 + $0x158] sm:$0xff] %v421
  %527 = vst [vmem:[%s2 + $0x160] sm:$0xff] %v424
  %528 = vst [vmem:[%s2 + $0x168] sm:$0xff] %v427
  %529 = vst [vmem:[%s2 + $0x170] sm:$0xff] %v430
  %530 = vst [vmem:[%s2 + $0x178] sm:$0xff] %v433
  %531 = vst [vmem:[%s2 + $0x180] sm:$0xff] %v436
  %532 = vst [vmem:[%s2 + $0x188] sm:$0xff] %v439
  %533 = vst [vmem:[%s2 + $0x190] sm:$0xff] %v442
  %534 = vst [vmem:[%s2 + $0x198] sm:$0xff] %v445
  %535 = vst [vmem:[%s2 + $0x1a0] sm:$0xff] %v448
  %536 = vst [vmem:[%s2 + $0x1a8] sm:$0xff] %v451
  %537 = vst [vmem:[%s2 + $0x1b0] sm:$0xff] %v454
  %538 = vst [vmem:[%s2 + $0x1b8] sm:$0xff] %v457
  %539 = vst [vmem:[%s2 + $0x1c0] sm:$0xff] %v460
  %540 = vst [vmem:[%s2 + $0x1c8] sm:$0xff] %v463
  %541 = vst [vmem:[%s2 + $0x1d0] sm:$0xff] %v466
  %542 = vst [vmem:[%s2 + $0x1d8] sm:$0xff] %v469
  %543 = vst [vmem:[%s2 + $0x1e0] sm:$0xff] %v472
  %544 = vst [vmem:[%s2 + $0x1e8] sm:$0xff] %v475
  %545 = vst [vmem:[%s2 + $0x1f0] sm:$0xff] %v478
  %546 = vst [vmem:[%s2 + $0x1f8] sm:$0xff] %v481
  %s547 = scalar_lea.vmem %s0, 16
  %v548 = vld [vmem:[%s547] sm:$0xff]
  %v549 = vld [vmem:[%s547 + $0x8] sm:$0x3]
  %v551 = vsel %vm270, %v549, 0
  %553 = vmatpush.msra.mxu0 0.0
  %554 = vmatpush.msra.mxu0 0.0
  %555 = vmatpush.msra.mxu0 0.0
  %556 = vmatpush.msra.mxu0 0.0
  %557 = vmatpush.msra.mxu0 0.0
  %558 = vmatpush.msra.mxu0 0.0
  %559 = vmatpush.msra.mxu0 0.0
  %560 = vmatpush.msra.mxu0 0.0
  %561 = vmatpush.msra.mxu0 0.0
  %562 = vmatpush.msra.mxu0 0.0
  %563 = vmatpush.msra.mxu0 0.0
  %564 = vmatpush.msra.mxu0 0.0
  %565 = vmatpush.msra.mxu0 0.0
  %566 = vmatpush.msra.mxu0 0.0
  %567 = vmatpush.msra.mxu0 %v551
  %568 = vmatpush.msra.mxu0 %v548
  %569 = vmatmul.f32.gmra.mxu0 %v79
  %v570 = vpop.f32.mrf.mxu0
  %v571 = vadd.f32 0.0, %v570
  %572 = vmatmul.f32.gmra.mxu0 %v82
  %v573 = vpop.f32.mrf.mxu0
  %v574 = vadd.f32 0.0, %v573
  %575 = vmatmul.f32.gmra.mxu0 %v85
  %v576 = vpop.f32.mrf.mxu0
  %v577 = vadd.f32 0.0, %v576
  %578 = vmatmul.f32.gmra.mxu0 %v88
  %v579 = vpop.f32.mrf.mxu0
  %v580 = vadd.f32 0.0, %v579
  %581 = vmatmul.f32.gmra.mxu0 %v91
  %v582 = vpop.f32.mrf.mxu0
  %v583 = vadd.f32 0.0, %v582
  %584 = vmatmul.f32.gmra.mxu0 %v94
  %v585 = vpop.f32.mrf.mxu0
  %v586 = vadd.f32 0.0, %v585
  %587 = vmatmul.f32.gmra.mxu0 %v97
  %v588 = vpop.f32.mrf.mxu0
  %v589 = vadd.f32 0.0, %v588
  %590 = vmatmul.f32.gmra.mxu0 %v100
  %v591 = vpop.f32.mrf.mxu0
  %v592 = vadd.f32 0.0, %v591
  %593 = vmatmul.f32.gmra.mxu0 %v103
  %v594 = vpop.f32.mrf.mxu0
  %v595 = vadd.f32 0.0, %v594
  %596 = vmatmul.f32.gmra.mxu0 %v106
  %v597 = vpop.f32.mrf.mxu0
  %v598 = vadd.f32 0.0, %v597
  %599 = vmatmul.f32.gmra.mxu0 %v109
  %v600 = vpop.f32.mrf.mxu0
  %v601 = vadd.f32 0.0, %v600
  %602 = vmatmul.f32.gmra.mxu0 %v112
  %v603 = vpop.f32.mrf.mxu0
  %v604 = vadd.f32 0.0, %v603
  %605 = vmatmul.f32.gmra.mxu0 %v115
  %v606 = vpop.f32.mrf.mxu0
  %v607 = vadd.f32 0.0, %v606
  %608 = vmatmul.f32.gmra.mxu0 %v118
  %v609 = vpop.f32.mrf.mxu0
  %v610 = vadd.f32 0.0, %v609
  %611 = vmatmul.f32.gmra.mxu0 %v121
  %v612 = vpop.f32.mrf.mxu0
  %v613 = vadd.f32 0.0, %v612
  %614 = vmatmul.f32.gmra.mxu0 %v124
  %v615 = vpop.f32.mrf.mxu0
  %v616 = vadd.f32 0.0, %v615
  %617 = vmatmul.f32.gmra.mxu0 %v127
  %v618 = vpop.f32.mrf.mxu0
  %v619 = vadd.f32 0.0, %v618
  %620 = vmatmul.f32.gmra.mxu0 %v130
  %v621 = vpop.f32.mrf.mxu0
  %v622 = vadd.f32 0.0, %v621
  %623 = vmatmul.f32.gmra.mxu0 %v133
  %v624 = vpop.f32.mrf.mxu0
  %v625 = vadd.f32 0.0, %v624
  %626 = vmatmul.f32.gmra.mxu0 %v136
  %v627 = vpop.f32.mrf.mxu0
  %v628 = vadd.f32 0.0, %v627
  %629 = vmatmul.f32.gmra.mxu0 %v139
  %v630 = vpop.f32.mrf.mxu0
  %v631 = vadd.f32 0.0, %v630
  %632 = vmatmul.f32.gmra.mxu0 %v142
  %v633 = vpop.f32.mrf.mxu0
  %v634 = vadd.f32 0.0, %v633
  %635 = vmatmul.f32.gmra.mxu0 %v145
  %v636 = vpop.f32.mrf.mxu0
  %v637 = vadd.f32 0.0, %v636
  %638 = vmatmul.f32.gmra.mxu0 %v148
  %v639 = vpop.f32.mrf.mxu0
  %v640 = vadd.f32 0.0, %v639
  %641 = vmatmul.f32.gmra.mxu0 %v151
  %v642 = vpop.f32.mrf.mxu0
  %v643 = vadd.f32 0.0, %v642
  %644 = vmatmul.f32.gmra.mxu0 %v154
  %v645 = vpop.f32.mrf.mxu0
  %v646 = vadd.f32 0.0, %v645
  %647 = vmatmul.f32.gmra.mxu0 %v157
  %v648 = vpop.f32.mrf.mxu0
  %v649 = vadd.f32 0.0, %v648
  %650 = vmatmul.f32.gmra.mxu0 %v160
  %v651 = vpop.f32.mrf.mxu0
  %v652 = vadd.f32 0.0, %v651
  %653 = vmatmul.f32.gmra.mxu0 %v163
  %v654 = vpop.f32.mrf.mxu0
  %v655 = vadd.f32 0.0, %v654
  %656 = vmatmul.f32.gmra.mxu0 %v166
  %v657 = vpop.f32.mrf.mxu0
  %v658 = vadd.f32 0.0, %v657
  %659 = vmatmul.f32.gmra.mxu0 %v169
  %v660 = vpop.f32.mrf.mxu0
  %v661 = vadd.f32 0.0, %v660
  %662 = vmatmul.f32.gmra.mxu0 %v172
  %v663 = vpop.f32.mrf.mxu0
  %v664 = vadd.f32 0.0, %v663
  %665 = vmatmul.f32.gmra.mxu0 %v175
  %v666 = vpop.f32.mrf.mxu0
  %v667 = vadd.f32 0.0, %v666
  %668 = vmatmul.f32.gmra.mxu0 %v178
  %v669 = vpop.f32.mrf.mxu0
  %v670 = vadd.f32 0.0, %v669
  %671 = vmatmul.f32.gmra.mxu0 %v181
  %v672 = vpop.f32.mrf.mxu0
  %v673 = vadd.f32 0.0, %v672
  %674 = vmatmul.f32.gmra.mxu0 %v184
  %v675 = vpop.f32.mrf.mxu0
  %v676 = vadd.f32 0.0, %v675
  %677 = vmatmul.f32.gmra.mxu0 %v187
  %v678 = vpop.f32.mrf.mxu0
  %v679 = vadd.f32 0.0, %v678
  %680 = vmatmul.f32.gmra.mxu0 %v190
  %v681 = vpop.f32.mrf.mxu0
  %v682 = vadd.f32 0.0, %v681
  %683 = vmatmul.f32.gmra.mxu0 %v193
  %v684 = vpop.f32.mrf.mxu0
  %v685 = vadd.f32 0.0, %v684
  %686 = vmatmul.f32.gmra.mxu0 %v196
  %v687 = vpop.f32.mrf.mxu0
  %v688 = vadd.f32 0.0, %v687
  %689 = vmatmul.f32.gmra.mxu0 %v199
  %v690 = vpop.f32.mrf.mxu0
  %v691 = vadd.f32 0.0, %v690
  %692 = vmatmul.f32.gmra.mxu0 %v202
  %v693 = vpop.f32.mrf.mxu0
  %v694 = vadd.f32 0.0, %v693
  %695 = vmatmul.f32.gmra.mxu0 %v205
  %v696 = vpop.f32.mrf.mxu0
  %v697 = vadd.f32 0.0, %v696
  %698 = vmatmul.f32.gmra.mxu0 %v208
  %v699 = vpop.f32.mrf.mxu0
  %v700 = vadd.f32 0.0, %v699
  %701 = vmatmul.f32.gmra.mxu0 %v211
  %v702 = vpop.f32.mrf.mxu0
  %v703 = vadd.f32 0.0, %v702
  %704 = vmatmul.f32.gmra.mxu0 %v214
  %v705 = vpop.f32.mrf.mxu0
  %v706 = vadd.f32 0.0, %v705
  %707 = vmatmul.f32.gmra.mxu0 %v217
  %v708 = vpop.f32.mrf.mxu0
  %v709 = vadd.f32 0.0, %v708
  %710 = vmatmul.f32.gmra.mxu0 %v220
  %v711 = vpop.f32.mrf.mxu0
  %v712 = vadd.f32 0.0, %v711
  %713 = vmatmul.f32.gmra.mxu0 %v223
  %v714 = vpop.f32.mrf.mxu0
  %v715 = vadd.f32 0.0, %v714
  %716 = vmatmul.f32.gmra.mxu0 %v226
  %v717 = vpop.f32.mrf.mxu0
  %v718 = vadd.f32 0.0, %v717
  %719 = vmatmul.f32.gmra.mxu0 %v229
  %v720 = vpop.f32.mrf.mxu0
  %v721 = vadd.f32 0.0, %v720
  %722 = vmatmul.f32.gmra.mxu0 %v232
  %v723 = vpop.f32.mrf.mxu0
  %v724 = vadd.f32 0.0, %v723
  %725 = vmatmul.f32.gmra.mxu0 %v235
  %v726 = vpop.f32.mrf.mxu0
  %v727 = vadd.f32 0.0, %v726
  %728 = vmatmul.f32.gmra.mxu0 %v238
  %v729 = vpop.f32.mrf.mxu0
  %v730 = vadd.f32 0.0, %v729
  %731 = vmatmul.f32.gmra.mxu0 %v241
  %v732 = vpop.f32.mrf.mxu0
  %v733 = vadd.f32 0.0, %v732
  %734 = vmatmul.f32.gmra.mxu0 %v244
  %v735 = vpop.f32.mrf.mxu0
  %v736 = vadd.f32 0.0, %v735
  %737 = vmatmul.f32.gmra.mxu0 %v247
  %v738 = vpop.f32.mrf.mxu0
  %v739 = vadd.f32 0.0, %v738
  %740 = vmatmul.f32.gmra.mxu0 %v250
  %v741 = vpop.f32.mrf.mxu0
  %v742 = vadd.f32 0.0, %v741
  %743 = vmatmul.f32.gmra.mxu0 %v253
  %v744 = vpop.f32.mrf.mxu0
  %v745 = vadd.f32 0.0, %v744
  %746 = vmatmul.f32.gmra.mxu0 %v256
  %v747 = vpop.f32.mrf.mxu0
  %v748 = vadd.f32 0.0, %v747
  %749 = vmatmul.f32.gmra.mxu0 %v259
  %v750 = vpop.f32.mrf.mxu0
  %v751 = vadd.f32 0.0, %v750
  %752 = vmatmul.f32.gmra.mxu0 %v262
  %v753 = vpop.f32.mrf.mxu0
  %v754 = vadd.f32 0.0, %v753
  %755 = vmatmul.f32.gmra.mxu0 %v265
  %v756 = vpop.f32.mrf.mxu0
  %v757 = vadd.f32 0.0, %v756
  %758 = vmatmul.f32.gmra.mxu0 %v268
  %v759 = vpop.f32.mrf.mxu0
  %v760 = vadd.f32 0.0, %v759
  %761 = vdwg.mxu0
  %s762 = scalar_lea.vmem %s2, 512
  %763 = vst [vmem:[%s762] sm:$0xff] %v571
  %764 = vst [vmem:[%s762 + $0x8] sm:$0xff] %v574
  %765 = vst [vmem:[%s762 + $0x10] sm:$0xff] %v577
  %766 = vst [vmem:[%s762 + $0x18] sm:$0xff] %v580
  %767 = vst [vmem:[%s762 + $0x20] sm:$0xff] %v583
  %768 = vst [vmem:[%s762 + $0x28] sm:$0xff] %v586
  %769 = vst [vmem:[%s762 + $0x30] sm:$0xff] %v589
  %770 = vst [vmem:[%s762 + $0x38] sm:$0xff] %v592
  %771 = vst [vmem:[%s762 + $0x40] sm:$0xff] %v595
  %772 = vst [vmem:[%s762 + $0x48] sm:$0xff] %v598
  %773 = vst [vmem:[%s762 + $0x50] sm:$0xff] %v601
  %774 = vst [vmem:[%s762 + $0x58] sm:$0xff] %v604
  %775 = vst [vmem:[%s762 + $0x60] sm:$0xff] %v607
  %776 = vst [vmem:[%s762 + $0x68] sm:$0xff] %v610
  %777 = vst [vmem:[%s762 + $0x70] sm:$0xff] %v613
  %778 = vst [vmem:[%s762 + $0x78] sm:$0xff] %v616
  %779 = vst [vmem:[%s762 + $0x80] sm:$0xff] %v619
  %780 = vst [vmem:[%s762 + $0x88] sm:$0xff] %v622
  %781 = vst [vmem:[%s762 + $0x90] sm:$0xff] %v625
  %782 = vst [vmem:[%s762 + $0x98] sm:$0xff] %v628
  %783 = vst [vmem:[%s762 + $0xa0] sm:$0xff] %v631
  %784 = vst [vmem:[%s762 + $0xa8] sm:$0xff] %v634
  %785 = vst [vmem:[%s762 + $0xb0] sm:$0xff] %v637
  %786 = vst [vmem:[%s762 + $0xb8] sm:$0xff] %v640
  %787 = vst [vmem:[%s762 + $0xc0] sm:$0xff] %v643
  %788 = vst [vmem:[%s762 + $0xc8] sm:$0xff] %v646
  %789 = vst [vmem:[%s762 + $0xd0] sm:$0xff] %v649
  %790 = vst [vmem:[%s762 + $0xd8] sm:$0xff] %v652
  %791 = vst [vmem:[%s762 + $0xe0] sm:$0xff] %v655
  %792 = vst [vmem:[%s762 + $0xe8] sm:$0xff] %v658
  %793 = vst [vmem:[%s762 + $0xf0] sm:$0xff] %v661
  %794 = vst [vmem:[%s762 + $0xf8] sm:$0xff] %v664
  %795 = vst [vmem:[%s762 + $0x100] sm:$0xff] %v667
  %796 = vst [vmem:[%s762 + $0x108] sm:$0xff] %v670
  %797 = vst [vmem:[%s762 + $0x110] sm:$0xff] %v673
  %798 = vst [vmem:[%s762 + $0x118] sm:$0xff] %v676
  %799 = vst [vmem:[%s762 + $0x120] sm:$0xff] %v679
  %800 = vst [vmem:[%s762 + $0x128] sm:$0xff] %v682
  %801 = vst [vmem:[%s762 + $0x130] sm:$0xff] %v685
  %802 = vst [vmem:[%s762 + $0x138] sm:$0xff] %v688
  %803 = vst [vmem:[%s762 + $0x140] sm:$0xff] %v691
  %804 = vst [vmem:[%s762 + $0x148] sm:$0xff] %v694
  %805 = vst [vmem:[%s762 + $0x150] sm:$0xff] %v697
  %806 = vst [vmem:[%s762 + $0x158] sm:$0xff] %v700
  %807 = vst [vmem:[%s762 + $0x160] sm:$0xff] %v703
  %808 = vst [vmem:[%s762 + $0x168] sm:$0xff] %v706
  %809 = vst [vmem:[%s762 + $0x170] sm:$0xff] %v709
  %810 = vst [vmem:[%s762 + $0x178] sm:$0xff] %v712
  %811 = vst [vmem:[%s762 + $0x180] sm:$0xff] %v715
  %812 = vst [vmem:[%s762 + $0x188] sm:$0xff] %v718
  %813 = vst [vmem:[%s762 + $0x190] sm:$0xff] %v721
  %814 = vst [vmem:[%s762 + $0x198] sm:$0xff] %v724
  %815 = vst [vmem:[%s762 + $0x1a0] sm:$0xff] %v727
  %816 = vst [vmem:[%s762 + $0x1a8] sm:$0xff] %v730
  %817 = vst [vmem:[%s762 + $0x1b0] sm:$0xff] %v733
  %818 = vst [vmem:[%s762 + $0x1b8] sm:$0xff] %v736
  %819 = vst [vmem:[%s762 + $0x1c0] sm:$0xff] %v739
  %820 = vst [vmem:[%s762 + $0x1c8] sm:$0xff] %v742
  %821 = vst [vmem:[%s762 + $0x1d0] sm:$0xff] %v745
  %822 = vst [vmem:[%s762 + $0x1d8] sm:$0xff] %v748
  %823 = vst [vmem:[%s762 + $0x1e0] sm:$0xff] %v751
  %824 = vst [vmem:[%s762 + $0x1e8] sm:$0xff] %v754
  %825 = vst [vmem:[%s762 + $0x1f0] sm:$0xff] %v757
  %826 = vst [vmem:[%s762 + $0x1f8] sm:$0xff] %v760
  // Predicated region
  $region10: #{model_forward.1} parent=0 // pred_check
    _
  $region11: #{model_forward.1} parent=0 // pred_check_branch
    %828 = sbr.rel (0) target = $region13
  $region12: #{model_forward.1} parent=0 // pred_region
    _
  $region13: #{model_forward.1} parent=0 // pred_fallthru
    _
  // Predicated region
  $region14: #{model_forward.1} parent=0 // pred_check
    _
  $region15: #{model_forward.1} parent=0 // pred_check_branch
    %830 = sbr.rel (0) target = $region17
  $region16: #{model_forward.1} parent=0 // pred_region
    _
  $region17: #{model_forward.1} parent=0 // pred_fallthru
    _

</llo_original>
